<compile_context>
chip_gen: v5e
topology: v5e:2x2
jax: 0.10.0
libtpu: 0.0.40
codegen_flags: <defaults>
</compile_context>

<pallas_src>
import math
import functools

import jax
import jax.numpy as jnp
from jax import lax
from jax.experimental import pallas as pl
from jax.experimental.pallas import tpu as pltpu


def _mha_kernel(q_ref, k_ref, v_ref, mask_ref,
                wqkv_ref, wo_ref, bo_ref,
                o_ref, *, heads, d_k):
    f32 = jnp.float32
    bf16 = jnp.bfloat16
    scale = f32(1.0 / math.sqrt(d_k))

    # ---- Q / K / V projections: bf16 operands, f32 accumulation, back-to-back MXU ----
    xq = q_ref[0].astype(bf16)            # (TQ, D)
    xk = k_ref[0].astype(bf16)            # (L,  D)
    xv = v_ref[0].astype(bf16)            # (L,  D)

    # wqkv_ref: (3, D, D) bf16, pre-transposed to (in, out) on the host.
    q = jnp.dot(xq, wqkv_ref[0], preferred_element_type=f32) * scale   # fold 1/sqrt(d_k)
    k = jnp.dot(xk, wqkv_ref[1], preferred_element_type=f32)
    v = jnp.dot(xv, wqkv_ref[2], preferred_element_type=f32)

    # ---- mask bias: computed ONCE per grid step (hoisted out of the head loop) ----
    m = mask_ref[0, 0].astype(f32)                          # (TQ, L), int8 -> f32
    bias = jnp.where(m == 0.0, f32(-1e9), f32(0.0))         # masked_fill(mask == 0, -1e9)

    q_bf = q.astype(bf16)
    k_bf = k.astype(bf16)
    v_bf = v.astype(bf16)
    wo = wo_ref[...]                                        # (D, D) bf16, (in, out)

    tq = q.shape[0]
    d_model = wo.shape[1]
    out = jnp.zeros((tq, d_model), dtype=f32)

    for h in range(heads):                                  # static unroll over heads
        lo = h * d_k
        qh = q_bf[:, lo:lo + d_k]                           # (TQ, d_k)
        kh = k_bf[:, lo:lo + d_k]                           # (L,  d_k)
        vh = v_bf[:, lo:lo + d_k]                           # (L,  d_k)

        # scores = (q * scale) @ k^T + mask_bias
        s = lax.dot_general(qh, kh, (((1,), (1,)), ((), ())),
                            preferred_element_type=f32) + bias          # (TQ, L)

        # softmax over last axis (f32); reciprocal goes to the EUP slot
        s_max = jnp.max(s, axis=-1, keepdims=True)
        p = jnp.exp(s - s_max)
        p = p * pl.reciprocal(jnp.sum(p, axis=-1, keepdims=True), approx=True)

        # fold the output projection into the head loop (no concat of head contexts):
        #   out += (p @ v_h) @ Wo_t[lo:lo+d_k, :]
        ctx_h = jnp.dot(p.astype(bf16), vh, preferred_element_type=f32)  # (TQ, d_k)
        out = out + jnp.dot(ctx_h.astype(bf16), wo[lo:lo + d_k, :],
                            preferred_element_type=f32)

    out = out + bo_ref[...]                                 # (1, D) bias broadcasts
    o_ref[0] = out.astype(o_ref.dtype)


def multi_headed_attention(query, key, value, mask, params, *, heads, q_tile=128):
    """query/key/value: (B, L, D) f32; mask: (B, 1, L, L), nonzero = attend."""
    B, L, D = query.shape
    assert key.shape == (B, L, D) and value.shape == (B, L, D)
    assert mask.shape == (B, 1, L, L)
    assert D % heads == 0, "hidden dim must be divisible by number of heads"
    d_k = D // heads

    tq = min(L, q_tile)
    assert L % tq == 0, "sequence length must be divisible by the query tile"
    n_q = L // tq

    # Host-side prep: nn.Linear weights (out, in) -> (in, out), cast to bf16, stack Q/K/V
    # weights into one tensor; output bias to (1, D) f32; mask to int8 (4x less DMA).
    wqkv = jnp.stack([params["wq"].T, params["wk"].T, params["wv"].T]).astype(jnp.bfloat16)
    wo_t = params["wo"].T.astype(jnp.bfloat16)
    bo = params["bo"].reshape(1, D).astype(jnp.float32)
    mask_i8 = mask.astype(jnp.int8)

    kernel = functools.partial(_mha_kernel, heads=heads, d_k=d_k)

    return pl.pallas_call(
        kernel,
        out_shape=jax.ShapeDtypeStruct((B, L, D), query.dtype),
        grid_spec=pltpu.PrefetchScalarGridSpec(
            num_scalar_prefetch=0,
            grid=(B, n_q),
            in_specs=[
                pl.BlockSpec((1, tq, D), lambda b, i: (b, i, 0)),        # query tile
                pl.BlockSpec((1, L, D), lambda b, i: (b, 0, 0)),         # key (full L)
                pl.BlockSpec((1, L, D), lambda b, i: (b, 0, 0)),         # value (full L)
                pl.BlockSpec((1, 1, tq, L), lambda b, i: (b, 0, i, 0)),  # mask tile (int8)
                pl.BlockSpec((3, D, D), lambda b, i: (0, 0, 0)),         # Wq/Wk/Wv^T (bf16)
                pl.BlockSpec((D, D), lambda b, i: (0, 0)),               # Wo^T (bf16)
                pl.BlockSpec((1, D), lambda b, i: (0, 0)),               # output bias (f32)
            ],
            out_specs=pl.BlockSpec((1, tq, D), lambda b, i: (b, i, 0)),
        ),
        compiler_params=pltpu.CompilerParams(
            dimension_semantics=("parallel", "parallel")),
    )(query, key, value, mask_i8, wqkv, wo_t, bo)


def _reference(query, key, value, mask, params, *, heads):
    """Pure-JAX f32 reference replicating the PyTorch forward (eval mode)."""
    B, L, D = query.shape
    d_k = D // heads

    def proj(x, w):   # nn.Linear(bias=False): x @ w.T
        return x @ w.T

    def split_heads(x):  # (B, L, D) -> (B, H, L, d_k)
        return x.reshape(B, L, heads, d_k).transpose(0, 2, 1, 3)

    q = split_heads(proj(query, params["wq"]))
    k = split_heads(proj(key, params["wk"]))
    v = split_heads(proj(value, params["wv"]))

    scores = jnp.einsum("bhld,bhmd->bhlm", q, k) / math.sqrt(d_k)
    scores = jnp.where(mask == 0, -1e9, scores)
    p = jax.nn.softmax(scores, axis=-1)
    ctx = jnp.einsum("bhlm,bhmd->bhld", p, v)
    ctx = ctx.transpose(0, 2, 1, 3).reshape(B, L, D)
    return ctx @ params["wo"].T + params["bo"]


if __name__ == "__main__":
    B, L, H_DIM, HEADS = 2, 8, 32, 4

    key0 = jax.random.PRNGKey(0)
    k_q, k_k, k_v, k_wq, k_wk, k_wv, k_wo, k_bo = jax.random.split(key0, 8)

    query = jax.random.normal(k_q, (B, L, H_DIM), dtype=jnp.float32)
    key_in = jax.random.normal(k_k, (B, L, H_DIM), dtype=jnp.float32)
    value = jax.random.normal(k_v, (B, L, H_DIM), dtype=jnp.float32)

    # Causal mask (B, 1, L, L), 1 = attend, 0 = masked.
    causal = jnp.tril(jnp.ones((L, L), dtype=jnp.int32))
    mask = jnp.broadcast_to(causal[None, None, :, :], (B, 1, L, L))

    # Deterministic parameter init (nn.Linear weights are (out, in)).
    bound = 1.0 / math.sqrt(H_DIM)
    params = {
        "wq": jax.random.uniform(k_wq, (H_DIM, H_DIM), jnp.float32, -bound, bound),
        "wk": jax.random.uniform(k_wk, (H_DIM, H_DIM), jnp.float32, -bound, bound),
        "wv": jax.random.uniform(k_wv, (H_DIM, H_DIM), jnp.float32, -bound, bound),
        "wo": jax.random.uniform(k_wo, (H_DIM, H_DIM), jnp.float32, -bound, bound),
        "bo": jax.random.uniform(k_bo, (H_DIM,), jnp.float32, -bound, bound),
    }

    out = multi_headed_attention(query, key_in, value, mask, params, heads=HEADS)
    out = jax.block_until_ready(out)

    ref = _reference(query, key_in, value, mask, params, heads=HEADS)
    assert out.shape == (B, L, H_DIM)
    # bf16 MXU operands + approx reciprocal vs. an f32 reference: allow bf16-level tolerance.
    assert jnp.allclose(out, ref, atol=5e-2, rtol=5e-2), "mismatch vs reference"

    print("KERNEL_OK")
</pallas_src>

<mosaic_0001>
module attributes {stable_mosaic.version = 11 : i64} {
  func.func @_mha_kernel(%arg0: i32, %arg1: i32, %arg2: memref<1x8x32xf32, #tpu.memory_space<vmem>>, %arg3: memref<1x8x32xf32, #tpu.memory_space<vmem>>, %arg4: memref<1x8x32xf32, #tpu.memory_space<vmem>>, %arg5: memref<1x1x8x8xi8, #tpu.memory_space<vmem>>, %arg6: memref<3x32x32xbf16, #tpu.memory_space<vmem>>, %arg7: memref<32x32xbf16, #tpu.memory_space<vmem>>, %arg8: memref<1x32xf32, #tpu.memory_space<vmem>>, %arg9: memref<1x8x32xf32, #tpu.memory_space<vmem>>) attributes {dimension_semantics = [#tpu.dimension_semantics<parallel>, #tpu.dimension_semantics<parallel>], iteration_bounds = array<i64: 2, 1>, scalar_prefetch = 0 : i64, scratch_operands = 0 : i64, tpu.core_type = #tpu.core_type<tc>, window_params = [{transform_indices = @transform_0, window_bounds = array<i64: 1, 8, 32>}, {transform_indices = @transform_1, window_bounds = array<i64: 1, 8, 32>}, {transform_indices = @transform_2, window_bounds = array<i64: 1, 8, 32>}, {transform_indices = @transform_3, window_bounds = array<i64: 1, 1, 8, 8>}, {pipeline_mode = #tpu.pipeline_mode<synchronous>, transform_indices = @transform_4, window_bounds = array<i64: 3, 32, 32>}, {pipeline_mode = #tpu.pipeline_mode<synchronous>, transform_indices = @transform_5, window_bounds = array<i64: 32, 32>}, {pipeline_mode = #tpu.pipeline_mode<synchronous>, transform_indices = @transform_6, window_bounds = array<i64: 1, 32>}, {transform_indices = @transform_7, window_bounds = array<i64: 1, 8, 32>}]} {
    %c0 = arith.constant 0 : index
    %c0_0 = arith.constant 0 : index
    %c0_1 = arith.constant 0 : index
    %0 = vector.load %arg2[%c0, %c0_0, %c0_1] : memref<1x8x32xf32, #tpu.memory_space<vmem>>, vector<1x8x32xf32>
    %1 = vector.shape_cast %0 : vector<1x8x32xf32> to vector<8x32xf32>
    %2 = arith.truncf %1 : vector<8x32xf32> to vector<8x32xbf16>
    %c0_2 = arith.constant 0 : index
    %c0_3 = arith.constant 0 : index
    %c0_4 = arith.constant 0 : index
    %3 = vector.load %arg3[%c0_2, %c0_3, %c0_4] : memref<1x8x32xf32, #tpu.memory_space<vmem>>, vector<1x8x32xf32>
    %4 = vector.shape_cast %3 : vector<1x8x32xf32> to vector<8x32xf32>
    %5 = arith.truncf %4 : vector<8x32xf32> to vector<8x32xbf16>
    %c0_5 = arith.constant 0 : index
    %c0_6 = arith.constant 0 : index
    %c0_7 = arith.constant 0 : index
    %6 = vector.load %arg4[%c0_5, %c0_6, %c0_7] : memref<1x8x32xf32, #tpu.memory_space<vmem>>, vector<1x8x32xf32>
    %7 = vector.shape_cast %6 : vector<1x8x32xf32> to vector<8x32xf32>
    %8 = arith.truncf %7 : vector<8x32xf32> to vector<8x32xbf16>
    %c0_8 = arith.constant 0 : index
    %c0_9 = arith.constant 0 : index
    %c0_10 = arith.constant 0 : index
    %9 = vector.load %arg6[%c0_8, %c0_9, %c0_10] : memref<3x32x32xbf16, #tpu.memory_space<vmem>>, vector<1x32x32xbf16>
    %10 = vector.shape_cast %9 : vector<1x32x32xbf16> to vector<32x32xbf16>
    %cst = arith.constant dense<0.000000e+00> : vector<8x32xf32>
    %11 = tpu.matmul %2, %10, %cst {dimension_numbers = #tpu.dot_dimension_numbers<[1], [0], [0], [1], [0, 0, 1, 1], [], []>} : vector<8x32xbf16>, vector<32x32xbf16>, vector<8x32xf32> -> vector<8x32xf32>
    %cst_11 = arith.constant 0.353553385 : f32
    %12 = vector.broadcast %cst_11 : f32 to vector<8x32xf32>
    %13 = arith.mulf %11, %12 : vector<8x32xf32>
    %c1 = arith.constant 1 : index
    %c0_12 = arith.constant 0 : index
    %c0_13 = arith.constant 0 : index
    %14 = vector.load %arg6[%c1, %c0_12, %c0_13] : memref<3x32x32xbf16, #tpu.memory_space<vmem>>, vector<1x32x32xbf16>
    %15 = vector.shape_cast %14 : vector<1x32x32xbf16> to vector<32x32xbf16>
    %cst_14 = arith.constant dense<0.000000e+00> : vector<8x32xf32>
    %16 = tpu.matmul %5, %15, %cst_14 {dimension_numbers = #tpu.dot_dimension_numbers<[1], [0], [0], [1], [0, 0, 1, 1], [], []>} : vector<8x32xbf16>, vector<32x32xbf16>, vector<8x32xf32> -> vector<8x32xf32>
    %c2 = arith.constant 2 : index
    %c0_15 = arith.constant 0 : index
    %c0_16 = arith.constant 0 : index
    %17 = vector.load %arg6[%c2, %c0_15, %c0_16] : memref<3x32x32xbf16, #tpu.memory_space<vmem>>, vector<1x32x32xbf16>
    %18 = vector.shape_cast %17 : vector<1x32x32xbf16> to vector<32x32xbf16>
    %cst_17 = arith.constant dense<0.000000e+00> : vector<8x32xf32>
    %19 = tpu.matmul %8, %18, %cst_17 {dimension_numbers = #tpu.dot_dimension_numbers<[1], [0], [0], [1], [0, 0, 1, 1], [], []>} : vector<8x32xbf16>, vector<32x32xbf16>, vector<8x32xf32> -> vector<8x32xf32>
    %c0_18 = arith.constant 0 : index
    %c0_19 = arith.constant 0 : index
    %c0_20 = arith.constant 0 : index
    %c0_21 = arith.constant 0 : index
    %20 = vector.load %arg5[%c0_18, %c0_19, %c0_20, %c0_21] : memref<1x1x8x8xi8, #tpu.memory_space<vmem>>, vector<1x1x8x8xi8>
    %21 = vector.shape_cast %20 : vector<1x1x8x8xi8> to vector<8x8xi8>
    %22 = arith.sitofp %21 : vector<8x8xi8> to vector<8x8xf32>
    %cst_22 = arith.constant 0.000000e+00 : f32
    %23 = vector.broadcast %cst_22 : f32 to vector<8x8xf32>
    %24 = arith.cmpf oeq, %22, %23 : vector<8x8xf32>
    %cst_23 = arith.constant -1.000000e+09 : f32
    %cst_24 = arith.constant 0.000000e+00 : f32
    %25 = vector.broadcast %cst_23 : f32 to vector<8x8xf32>
    %26 = vector.broadcast %cst_24 : f32 to vector<8x8xf32>
    %27 = arith.select %24, %25, %26 : vector<8x8xi1>, vector<8x8xf32>
    %28 = arith.truncf %13 : vector<8x32xf32> to vector<8x32xbf16>
    %29 = arith.truncf %16 : vector<8x32xf32> to vector<8x32xbf16>
    %30 = arith.truncf %19 : vector<8x32xf32> to vector<8x32xbf16>
    %c0_25 = arith.constant 0 : index
    %c0_26 = arith.constant 0 : index
    %31 = vector.load %arg7[%c0_25, %c0_26] : memref<32x32xbf16, #tpu.memory_space<vmem>>, vector<32x32xbf16>
    %cst_27 = arith.constant 0.000000e+00 : f32
    %32 = vector.broadcast %cst_27 : f32 to vector<8x32xf32>
    %33 = vector.extract_strided_slice %28 {offsets = [0, 0], sizes = [8, 8], strides = [1, 1]} : vector<8x32xbf16> to vector<8x8xbf16>
    %34 = vector.extract_strided_slice %29 {offsets = [0, 0], sizes = [8, 8], strides = [1, 1]} : vector<8x32xbf16> to vector<8x8xbf16>
    %35 = vector.extract_strided_slice %30 {offsets = [0, 0], sizes = [8, 8], strides = [1, 1]} : vector<8x32xbf16> to vector<8x8xbf16>
    %cst_28 = arith.constant dense<0.000000e+00> : vector<8x8xf32>
    %36 = tpu.matmul %33, %34, %cst_28 {dimension_numbers = #tpu.dot_dimension_numbers<[1], [1], [0], [0], [0, 0, 1, 0], [], []>} : vector<8x8xbf16>, vector<8x8xbf16>, vector<8x8xf32> -> vector<8x8xf32>
    %37 = arith.addf %36, %27 : vector<8x8xf32>
    %cst_29 = arith.constant dense<0xFF800000> : vector<8xf32>
    %38 = vector.multi_reduction <maximumf>, %37, %cst_29 [1] : vector<8x8xf32> to vector<8xf32>
    %39 = vector.shape_cast %38 : vector<8xf32> to vector<8x1xf32>
    %40 = vector.broadcast %39 : vector<8x1xf32> to vector<8x8xf32>
    %41 = arith.subf %37, %40 : vector<8x8xf32>
    %42 = math.exp %41 : vector<8x8xf32>
    %cst_30 = arith.constant dense<0.000000e+00> : vector<8xf32>
    %43 = vector.multi_reduction <add>, %42, %cst_30 [1] : vector<8x8xf32> to vector<8xf32>
    %44 = vector.shape_cast %43 : vector<8xf32> to vector<8x1xf32>
    %45 = tpu.reciprocal %44 {approx = true} : vector<8x1xf32> -> vector<8x1xf32>
    %46 = vector.broadcast %45 : vector<8x1xf32> to vector<8x8xf32>
    %47 = arith.mulf %42, %46 : vector<8x8xf32>
    %48 = arith.truncf %47 : vector<8x8xf32> to vector<8x8xbf16>
    %cst_31 = arith.constant dense<0.000000e+00> : vector<8x8xf32>
    %49 = tpu.matmul %48, %35, %cst_31 {dimension_numbers = #tpu.dot_dimension_numbers<[1], [0], [0], [1], [0, 0, 1, 1], [], []>} : vector<8x8xbf16>, vector<8x8xbf16>, vector<8x8xf32> -> vector<8x8xf32>
    %50 = arith.truncf %49 : vector<8x8xf32> to vector<8x8xbf16>
    %51 = vector.extract_strided_slice %31 {offsets = [0, 0], sizes = [8, 32], strides = [1, 1]} : vector<32x32xbf16> to vector<8x32xbf16>
    %cst_32 = arith.constant dense<0.000000e+00> : vector<8x32xf32>
    %52 = tpu.matmul %50, %51, %cst_32 {dimension_numbers = #tpu.dot_dimension_numbers<[1], [0], [0], [1], [0, 0, 1, 1], [], []>} : vector<8x8xbf16>, vector<8x32xbf16>, vector<8x32xf32> -> vector<8x32xf32>
    %53 = arith.addf %32, %52 : vector<8x32xf32>
    %54 = vector.extract_strided_slice %28 {offsets = [0, 8], sizes = [8, 8], strides = [1, 1]} : vector<8x32xbf16> to vector<8x8xbf16>
    %55 = vector.extract_strided_slice %29 {offsets = [0, 8], sizes = [8, 8], strides = [1, 1]} : vector<8x32xbf16> to vector<8x8xbf16>
    %56 = vector.extract_strided_slice %30 {offsets = [0, 8], sizes = [8, 8], strides = [1, 1]} : vector<8x32xbf16> to vector<8x8xbf16>
    %cst_33 = arith.constant dense<0.000000e+00> : vector<8x8xf32>
    %57 = tpu.matmul %54, %55, %cst_33 {dimension_numbers = #tpu.dot_dimension_numbers<[1], [1], [0], [0], [0, 0, 1, 0], [], []>} : vector<8x8xbf16>, vector<8x8xbf16>, vector<8x8xf32> -> vector<8x8xf32>
    %58 = arith.addf %57, %27 : vector<8x8xf32>
    %cst_34 = arith.constant dense<0xFF800000> : vector<8xf32>
    %59 = vector.multi_reduction <maximumf>, %58, %cst_34 [1] : vector<8x8xf32> to vector<8xf32>
    %60 = vector.shape_cast %59 : vector<8xf32> to vector<8x1xf32>
    %61 = vector.broadcast %60 : vector<8x1xf32> to vector<8x8xf32>
    %62 = arith.subf %58, %61 : vector<8x8xf32>
    %63 = math.exp %62 : vector<8x8xf32>
    %cst_35 = arith.constant dense<0.000000e+00> : vector<8xf32>
    %64 = vector.multi_reduction <add>, %63, %cst_35 [1] : vector<8x8xf32> to vector<8xf32>
    %65 = vector.shape_cast %64 : vector<8xf32> to vector<8x1xf32>
    %66 = tpu.reciprocal %65 {approx = true} : vector<8x1xf32> -> vector<8x1xf32>
    %67 = vector.broadcast %66 : vector<8x1xf32> to vector<8x8xf32>
    %68 = arith.mulf %63, %67 : vector<8x8xf32>
    %69 = arith.truncf %68 : vector<8x8xf32> to vector<8x8xbf16>
    %cst_36 = arith.constant dense<0.000000e+00> : vector<8x8xf32>
    %70 = tpu.matmul %69, %56, %cst_36 {dimension_numbers = #tpu.dot_dimension_numbers<[1], [0], [0], [1], [0, 0, 1, 1], [], []>} : vector<8x8xbf16>, vector<8x8xbf16>, vector<8x8xf32> -> vector<8x8xf32>
    %71 = arith.truncf %70 : vector<8x8xf32> to vector<8x8xbf16>
    %72 = vector.extract_strided_slice %31 {offsets = [8, 0], sizes = [8, 32], strides = [1, 1]} : vector<32x32xbf16> to vector<8x32xbf16>
    %cst_37 = arith.constant dense<0.000000e+00> : vector<8x32xf32>
    %73 = tpu.matmul %71, %72, %cst_37 {dimension_numbers = #tpu.dot_dimension_numbers<[1], [0], [0], [1], [0, 0, 1, 1], [], []>} : vector<8x8xbf16>, vector<8x32xbf16>, vector<8x32xf32> -> vector<8x32xf32>
    %74 = arith.addf %53, %73 : vector<8x32xf32>
    %75 = vector.extract_strided_slice %28 {offsets = [0, 16], sizes = [8, 8], strides = [1, 1]} : vector<8x32xbf16> to vector<8x8xbf16>
    %76 = vector.extract_strided_slice %29 {offsets = [0, 16], sizes = [8, 8], strides = [1, 1]} : vector<8x32xbf16> to vector<8x8xbf16>
    %77 = vector.extract_strided_slice %30 {offsets = [0, 16], sizes = [8, 8], strides = [1, 1]} : vector<8x32xbf16> to vector<8x8xbf16>
    %cst_38 = arith.constant dense<0.000000e+00> : vector<8x8xf32>
    %78 = tpu.matmul %75, %76, %cst_38 {dimension_numbers = #tpu.dot_dimension_numbers<[1], [1], [0], [0], [0, 0, 1, 0], [], []>} : vector<8x8xbf16>, vector<8x8xbf16>, vector<8x8xf32> -> vector<8x8xf32>
    %79 = arith.addf %78, %27 : vector<8x8xf32>
    %cst_39 = arith.constant dense<0xFF800000> : vector<8xf32>
    %80 = vector.multi_reduction <maximumf>, %79, %cst_39 [1] : vector<8x8xf32> to vector<8xf32>
    %81 = vector.shape_cast %80 : vector<8xf32> to vector<8x1xf32>
    %82 = vector.broadcast %81 : vector<8x1xf32> to vector<8x8xf32>
    %83 = arith.subf %79, %82 : vector<8x8xf32>
    %84 = math.exp %83 : vector<8x8xf32>
    %cst_40 = arith.constant dense<0.000000e+00> : vector<8xf32>
    %85 = vector.multi_reduction <add>, %84, %cst_40 [1] : vector<8x8xf32> to vector<8xf32>
    %86 = vector.shape_cast %85 : vector<8xf32> to vector<8x1xf32>
    %87 = tpu.reciprocal %86 {approx = true} : vector<8x1xf32> -> vector<8x1xf32>
    %88 = vector.broadcast %87 : vector<8x1xf32> to vector<8x8xf32>
    %89 = arith.mulf %84, %88 : vector<8x8xf32>
    %90 = arith.truncf %89 : vector<8x8xf32> to vector<8x8xbf16>
    %cst_41 = arith.constant dense<0.000000e+00> : vector<8x8xf32>
    %91 = tpu.matmul %90, %77, %cst_41 {dimension_numbers = #tpu.dot_dimension_numbers<[1], [0], [0], [1], [0, 0, 1, 1], [], []>} : vector<8x8xbf16>, vector<8x8xbf16>, vector<8x8xf32> -> vector<8x8xf32>
    %92 = arith.truncf %91 : vector<8x8xf32> to vector<8x8xbf16>
    %93 = vector.extract_strided_slice %31 {offsets = [16, 0], sizes = [8, 32], strides = [1, 1]} : vector<32x32xbf16> to vector<8x32xbf16>
    %cst_42 = arith.constant dense<0.000000e+00> : vector<8x32xf32>
    %94 = tpu.matmul %92, %93, %cst_42 {dimension_numbers = #tpu.dot_dimension_numbers<[1], [0], [0], [1], [0, 0, 1, 1], [], []>} : vector<8x8xbf16>, vector<8x32xbf16>, vector<8x32xf32> -> vector<8x32xf32>
    %95 = arith.addf %74, %94 : vector<8x32xf32>
    %96 = vector.extract_strided_slice %28 {offsets = [0, 24], sizes = [8, 8], strides = [1, 1]} : vector<8x32xbf16> to vector<8x8xbf16>
    %97 = vector.extract_strided_slice %29 {offsets = [0, 24], sizes = [8, 8], strides = [1, 1]} : vector<8x32xbf16> to vector<8x8xbf16>
    %98 = vector.extract_strided_slice %30 {offsets = [0, 24], sizes = [8, 8], strides = [1, 1]} : vector<8x32xbf16> to vector<8x8xbf16>
    %cst_43 = arith.constant dense<0.000000e+00> : vector<8x8xf32>
    %99 = tpu.matmul %96, %97, %cst_43 {dimension_numbers = #tpu.dot_dimension_numbers<[1], [1], [0], [0], [0, 0, 1, 0], [], []>} : vector<8x8xbf16>, vector<8x8xbf16>, vector<8x8xf32> -> vector<8x8xf32>
    %100 = arith.addf %99, %27 : vector<8x8xf32>
    %cst_44 = arith.constant dense<0xFF800000> : vector<8xf32>
    %101 = vector.multi_reduction <maximumf>, %100, %cst_44 [1] : vector<8x8xf32> to vector<8xf32>
    %102 = vector.shape_cast %101 : vector<8xf32> to vector<8x1xf32>
    %103 = vector.broadcast %102 : vector<8x1xf32> to vector<8x8xf32>
    %104 = arith.subf %100, %103 : vector<8x8xf32>
    %105 = math.exp %104 : vector<8x8xf32>
    %cst_45 = arith.constant dense<0.000000e+00> : vector<8xf32>
    %106 = vector.multi_reduction <add>, %105, %cst_45 [1] : vector<8x8xf32> to vector<8xf32>
    %107 = vector.shape_cast %106 : vector<8xf32> to vector<8x1xf32>
    %108 = tpu.reciprocal %107 {approx = true} : vector<8x1xf32> -> vector<8x1xf32>
    %109 = vector.broadcast %108 : vector<8x1xf32> to vector<8x8xf32>
    %110 = arith.mulf %105, %109 : vector<8x8xf32>
    %111 = arith.truncf %110 : vector<8x8xf32> to vector<8x8xbf16>
    %cst_46 = arith.constant dense<0.000000e+00> : vector<8x8xf32>
    %112 = tpu.matmul %111, %98, %cst_46 {dimension_numbers = #tpu.dot_dimension_numbers<[1], [0], [0], [1], [0, 0, 1, 1], [], []>} : vector<8x8xbf16>, vector<8x8xbf16>, vector<8x8xf32> -> vector<8x8xf32>
    %113 = arith.truncf %112 : vector<8x8xf32> to vector<8x8xbf16>
    %114 = vector.extract_strided_slice %31 {offsets = [24, 0], sizes = [8, 32], strides = [1, 1]} : vector<32x32xbf16> to vector<8x32xbf16>
    %cst_47 = arith.constant dense<0.000000e+00> : vector<8x32xf32>
    %115 = tpu.matmul %113, %114, %cst_47 {dimension_numbers = #tpu.dot_dimension_numbers<[1], [0], [0], [1], [0, 0, 1, 1], [], []>} : vector<8x8xbf16>, vector<8x32xbf16>, vector<8x32xf32> -> vector<8x32xf32>
    %116 = arith.addf %95, %115 : vector<8x32xf32>
    %c0_48 = arith.constant 0 : index
    %c0_49 = arith.constant 0 : index
    %117 = vector.load %arg8[%c0_48, %c0_49] : memref<1x32xf32, #tpu.memory_space<vmem>>, vector<1x32xf32>
    %118 = vector.broadcast %117 : vector<1x32xf32> to vector<8x32xf32>
    %119 = arith.addf %116, %118 : vector<8x32xf32>
    %c0_50 = arith.constant 0 : index
    %c0_51 = arith.constant 0 : index
    %c0_52 = arith.constant 0 : index
    %120 = vector.load %arg9[%c0_50, %c0_51, %c0_52] : memref<1x8x32xf32, #tpu.memory_space<vmem>>, vector<1x8x32xf32>
    %121 = vector.shape_cast %120 : vector<1x8x32xf32> to vector<8x32xf32>
    %122 = vector.shape_cast %119 : vector<8x32xf32> to vector<1x8x32xf32>
    tpu.vector_store %arg9[%c0_50, %c0_51, %c0_52], %122 {strides = array<i32>} : memref<1x8x32xf32, #tpu.memory_space<vmem>>, vector<1x8x32xf32>,
    return
  }
  func.func @transform_0(%arg0: i32, %arg1: i32) -> (i32, i32, i32) {
    %c0_i32 = arith.constant 0 : i32
    %c0_i32_0 = arith.constant 0 : i32
    return %arg0, %arg1, %c0_i32 : i32, i32, i32
  }
  func.func @transform_1(%arg0: i32, %arg1: i32) -> (i32, i32, i32) {
    %c0_i32 = arith.constant 0 : i32
    %c0_i32_0 = arith.constant 0 : i32
    %c0_i32_1 = arith.constant 0 : i32
    return %arg0, %c0_i32, %c0_i32_0 : i32, i32, i32
  }
  func.func @transform_2(%arg0: i32, %arg1: i32) -> (i32, i32, i32) {
    %c0_i32 = arith.constant 0 : i32
    %c0_i32_0 = arith.constant 0 : i32
    %c0_i32_1 = arith.constant 0 : i32
    return %arg0, %c0_i32, %c0_i32_0 : i32, i32, i32
  }
  func.func @transform_3(%arg0: i32, %arg1: i32) -> (i32, i32, i32, i32) {
    %c0_i32 = arith.constant 0 : i32
    %c0_i32_0 = arith.constant 0 : i32
    %c0_i32_1 = arith.constant 0 : i32
    return %arg0, %c0_i32, %arg1, %c0_i32_0 : i32, i32, i32, i32
  }
  func.func @transform_4(%arg0: i32, %arg1: i32) -> (i32, i32, i32) {
    %c0_i32 = arith.constant 0 : i32
    %c0_i32_0 = arith.constant 0 : i32
    %c0_i32_1 = arith.constant 0 : i32
    %c0_i32_2 = arith.constant 0 : i32
    return %c0_i32, %c0_i32_0, %c0_i32_1 : i32, i32, i32
  }
  func.func @transform_5(%arg0: i32, %arg1: i32) -> (i32, i32) {
    %c0_i32 = arith.constant 0 : i32
    %c0_i32_0 = arith.constant 0 : i32
    %c0_i32_1 = arith.constant 0 : i32
    return %c0_i32, %c0_i32_0 : i32, i32
  }
  func.func @transform_6(%arg0: i32, %arg1: i32) -> (i32, i32) {
    %c0_i32 = arith.constant 0 : i32
    %c0_i32_0 = arith.constant 0 : i32
    %c0_i32_1 = arith.constant 0 : i32
    return %c0_i32, %c0_i32_0 : i32, i32
  }
  func.func @transform_7(%arg0: i32, %arg1: i32) -> (i32, i32, i32) {
    %c0_i32 = arith.constant 0 : i32
    %c0_i32_0 = arith.constant 0 : i32
    return %arg0, %arg1, %c0_i32 : i32, i32, i32
  }
}

</mosaic_0001>

<llo_original>
// kernel: tpu_custom_call.1
$region0: #{tpu_custom_call.1}
  #allocation0 [shape = 'u32[]', space=smem, size = 0x4, offset = 0x4, fixed_abs, tag = 'smem constant byte address 0x4 - core index']
  #allocation1 [shape = 'u32[72,128]{1,0:T(1,128)}', space=vmem, size = 0x9000, scoped, tag = 'internal scratch']
  %s0 = inlined_call_operand.hbm [shape: f32[2,8,32], index: 0, kind: input, shape index: {}]
  %s1 = inlined_call_operand.hbm [shape: f32[2,8,32], index: 1, kind: input, shape index: {}]
  %s2 = inlined_call_operand.hbm [shape: f32[2,8,32], index: 2, kind: input, shape index: {}]
  %s3 = inlined_call_operand.hbm [shape: s8[2,1,8,8], index: 3, kind: input, shape index: {}]
  %s4 = inlined_call_operand.hbm [shape: bf16[3,32,32], index: 4, kind: input, shape index: {}]
  %s5 = inlined_call_operand.hbm [shape: bf16[32,32], index: 5, kind: input, shape index: {}]
  %s6 = inlined_call_operand.vmem [shape: f32[1,32], index: 6, kind: input, shape index: {}]
  %s7 = inlined_call_operand.hbm [shape: f32[2,8,32], index: 7, kind: output, shape index: {}]
  %s8 = sld [smem:[#allocation0]]
  $region85: #{tpu_custom_call.1} parent=0
    _
  %s10 = ssub.s32 1, %s8
  %s11 = scalar_select 0, %s10, %s8
  $region1: #{tpu_custom_call.1} parent=0
    #allocation2 [shape = 'u8[8192]{0}', space=vmem, size = 0x2000, scoped, tag = 'input window, operand 0']
    #allocation3 [shape = 's32[2]{0}', space=sflag, size = 0x8, scoped, tag = 'scoped memory for tpu_custom_call.1']
    #allocation4 [shape = 's32[2]{0}', space=sflag, size = 0x8, scoped, tag = 'scoped memory for tpu_custom_call.1']
    #allocation5 [shape = 'u8[8192]{0}', space=vmem, size = 0x2000, scoped, tag = 'input window, operand 1']
    #allocation6 [shape = 's32[2]{0}', space=sflag, size = 0x8, scoped, tag = 'scoped memory for tpu_custom_call.1']
    #allocation7 [shape = 'u8[8192]{0}', space=vmem, size = 0x2000, scoped, tag = 'input window, operand 2']
    #allocation8 [shape = 'u8[2048]{0}', space=vmem, size = 0x800, scoped, tag = 'input window, operand 3']
    #allocation9 [shape = 's32[2]{0}', space=sflag, size = 0x8, scoped, tag = 'scoped memory for tpu_custom_call.1']
    #allocation10 [shape = 'u8[24576]{0}', space=vmem, size = 0x6000, scoped, tag = 'input window, operand 4, single buffered']
    #allocation11 [shape = 'u8[8192]{0}', space=vmem, size = 0x2000, scoped, tag = 'input window, operand 5, single buffered']
    #allocation12 [shape = 's32[1]{0}', space=sflag, size = 0x4, scoped, tag = 'scoped memory for tpu_custom_call.1']
    #allocation13 [shape = 'u8[8192]{0}', space=vmem, size = 0x2000, scoped, tag = 'output window, operand 0']
    %12 = vsyncpa [#allocation3], 0
    %s13 = scalar_lea.sflag [#allocation3], 1
    %14 = vsyncpa %s13, 0
    %15 = vsyncpa [#allocation6], 0
    %s16 = scalar_lea.sflag [#allocation6], 1
    %17 = vsyncpa %s16, 0
    %18 = vsyncpa [#allocation9], 0
    %s19 = scalar_lea.sflag [#allocation9], 1
    %20 = vsyncpa %s19, 0
    %21 = vsyncpa [#allocation12], 0
    %22 = vsyncpa [#allocation4], 0
    %s23 = scalar_lea.sflag [#allocation4], 1
    %24 = vsyncpa %s23, 0
    loop: start=0, step=1, limit=4
    $region2: #{tpu_custom_call.1} parent=1 // loop_pre_header
      _
    $region3: #{tpu_custom_call.1} parent=1 // loop_header
      %s26 = sphi 0, %s30
      %p27 = scmp.ge.s32.totalorder %s26, 4
      %s33 = sphi 0, %s45
      %s34 = sphi 0, %s41
      %s35 = sphi 0, %s33
      %s36 = sphi 0, %s34
      %s37 = sphi 0, %s35
      %s38 = sphi 0, %s36
      %s50 = sphi 0, %s52
      %s53 = sphi 0, %s50
      %s54 = sphi 0, %s53
      %s70 = sphi 0, %s54
      %s76 = sphi 0, %s78
      %s79 = sphi 0, %s76
      %s80 = sphi 0, %s79
      %s96 = sphi 0, %s80
      %s102 = sphi 0, %s104
      %s105 = sphi 0, %s102
      %s106 = sphi 0, %s105
      %s122 = sphi 0, %s106
      %s130 = sphi 0, %s132
      %s133 = sphi 0, %s130
      %s134 = sphi 0, %s133
      %s150 = sphi 0, %s134
      %s154 = sphi 0, %s154
      %s156 = sphi 0, %s154
      %s157 = sphi 0, %s156
      %s171 = sphi 0, %s157
      %s175 = sphi 0, %s175
      %s177 = sphi 0, %s175
      %s178 = sphi 0, %s177
      %s192 = sphi 0, %s178
      %s196 = sphi 0, %s196
      %s198 = sphi 0, %s196
      %s199 = sphi 0, %s198
      %s213 = sphi 0, %s199
      %s221 = sphi 0, %s223
      %s224 = sphi 0, %s221
      %s225 = sphi 0, %s224
      %s241 = sphi 0, %s225
    $region4: #{tpu_custom_call.1} parent=1 // loop_header_branch
      %29 = sbr.rel (%p27) target = $region8
    $region5: #{tpu_custom_call.1} parent=1 // loop_body
      %s31 = ssub.s32 %s26, 1
      %s32 = ssub.s32 %s26, 2
      %s39 = sadd.s32 1, %s34
      %p40 = scmp.ge.s32.totalorder %s39, 1
      %s41 = scalar_select %p40, 0, %s39
      %s42 = sadd.s32 1, %s33
      %s43 = scalar_select %p40, %s42, %s33
      %p44 = scmp.ge.s32.totalorder %s43, 2
      %s45 = scalar_select %p44, 0, %s43
      %s46 = ssub.s32 %s33, %s45
      %s47 = ssub.s32 %s34, %s41
      %s48 = sor.u32 %s46, %s47
      %p49 = scmp.eq.s32.totalorder %s48, 0
      %s51 = sadd.s32 %s50, 1
      %s52 = scalar_select %p49, %s50, %s51
      %p55 = pneg %p49
      %p56 = scmp.eq.s32.totalorder %s26, 1
      %p57 = por %p55, %p56
      %p58 = scmp.ne.s32.totalorder %s50, %s53
      %p59 = scmp.eq.s32.totalorder %s26, 0
      %p60 = por %p58, %p59
      %p61 = scmp.ne.s32.totalorder %s50, %s53
      %p62 = scmp.eq.s32.totalorder %s31, 1
      %p63 = por %p61, %p62
      %p64 = scmp.ne.s32.totalorder %s53, %s54
      %p65 = scmp.eq.s32.totalorder %s31, 0
      %p66 = por %p64, %p65
      %p67 = scmp.ne.s32.totalorder %s53, %s54
      %p68 = scmp.eq.s32.totalorder %s32, 1
      %p69 = por %p67, %p68
      %p71 = scmp.ne.s32.totalorder %s54, %s70
      %p72 = scmp.eq.s32.totalorder %s32, 0
      %p73 = por %p71, %p72
      %s74 = ssub.s32 %s33, %s45
      %p75 = scmp.eq.s32.totalorder %s74, 0
      %s77 = sadd.s32 %s76, 1
      %s78 = scalar_select %p75, %s76, %s77
      %p81 = pneg %p75
      %p82 = scmp.eq.s32.totalorder %s26, 1
      %p83 = por %p81, %p82
      %p84 = scmp.ne.s32.totalorder %s76, %s79
      %p85 = scmp.eq.s32.totalorder %s26, 0
      %p86 = por %p84, %p85
      %p87 = scmp.ne.s32.totalorder %s76, %s79
      %p88 = scmp.eq.s32.totalorder %s31, 1
      %p89 = por %p87, %p88
      %p90 = scmp.ne.s32.totalorder %s79, %s80
      %p91 = scmp.eq.s32.totalorder %s31, 0
      %p92 = por %p90, %p91
      %p93 = scmp.ne.s32.totalorder %s79, %s80
      %p94 = scmp.eq.s32.totalorder %s32, 1
      %p95 = por %p93, %p94
      %p97 = scmp.ne.s32.totalorder %s80, %s96
      %p98 = scmp.eq.s32.totalorder %s32, 0
      %p99 = por %p97, %p98
      %s100 = ssub.s32 %s33, %s45
      %p101 = scmp.eq.s32.totalorder %s100, 0
      %s103 = sadd.s32 %s102, 1
      %s104 = scalar_select %p101, %s102, %s103
      %p107 = pneg %p101
      %p108 = scmp.eq.s32.totalorder %s26, 1
      %p109 = por %p107, %p108
      %p110 = scmp.ne.s32.totalorder %s102, %s105
      %p111 = scmp.eq.s32.totalorder %s26, 0
      %p112 = por %p110, %p111
      %p113 = scmp.ne.s32.totalorder %s102, %s105
      %p114 = scmp.eq.s32.totalorder %s31, 1
      %p115 = por %p113, %p114
      %p116 = scmp.ne.s32.totalorder %s105, %s106
      %p117 = scmp.eq.s32.totalorder %s31, 0
      %p118 = por %p116, %p117
      %p119 = scmp.ne.s32.totalorder %s105, %s106
      %p120 = scmp.eq.s32.totalorder %s32, 1
      %p121 = por %p119, %p120
      %p123 = scmp.ne.s32.totalorder %s106, %s122
      %p124 = scmp.eq.s32.totalorder %s32, 0
      %p125 = por %p123, %p124
      %s126 = ssub.s32 %s33, %s45
      %s127 = ssub.s32 %s34, %s41
      %s128 = sor.u32 %s126, %s127
      %p129 = scmp.eq.s32.totalorder %s128, 0
      %s131 = sadd.s32 %s130, 1
      %s132 = scalar_select %p129, %s130, %s131
      %p135 = pneg %p129
      %p136 = scmp.eq.s32.totalorder %s26, 1
      %p137 = por %p135, %p136
      %p138 = scmp.ne.s32.totalorder %s130, %s133
      %p139 = scmp.eq.s32.totalorder %s26, 0
      %p140 = por %p138, %p139
      %p141 = scmp.ne.s32.totalorder %s130, %s133
      %p142 = scmp.eq.s32.totalorder %s31, 1
      %p143 = por %p141, %p142
      %p144 = scmp.ne.s32.totalorder %s133, %s134
      %p145 = scmp.eq.s32.totalorder %s31, 0
      %p146 = por %p144, %p145
      %p147 = scmp.ne.s32.totalorder %s133, %s134
      %p148 = scmp.eq.s32.totalorder %s32, 1
      %p149 = por %p147, %p148
      %p151 = scmp.ne.s32.totalorder %s134, %s150
      %p152 = scmp.eq.s32.totalorder %s32, 0
      %p153 = por %p151, %p152
      %s155 = sadd.s32 %s154, 1
      %p158 = scmp.eq.s32.totalorder %s26, 1
      %p159 = scmp.ne.s32.totalorder %s154, %s156
      %p160 = scmp.eq.s32.totalorder %s26, 0
      %p161 = por %p159, %p160
      %p162 = scmp.ne.s32.totalorder %s154, %s156
      %p163 = scmp.eq.s32.totalorder %s31, 1
      %p164 = por %p162, %p163
      %p165 = scmp.ne.s32.totalorder %s156, %s157
      %p166 = scmp.eq.s32.totalorder %s31, 0
      %p167 = por %p165, %p166
      %p168 = scmp.ne.s32.totalorder %s156, %s157
      %p169 = scmp.eq.s32.totalorder %s32, 1
      %p170 = por %p168, %p169
      %p172 = scmp.ne.s32.totalorder %s157, %s171
      %p173 = scmp.eq.s32.totalorder %s32, 0
      %p174 = por %p172, %p173
      %s176 = sadd.s32 %s175, 1
      %p179 = scmp.eq.s32.totalorder %s26, 1
      %p180 = scmp.ne.s32.totalorder %s175, %s177
      %p181 = scmp.eq.s32.totalorder %s26, 0
      %p182 = por %p180, %p181
      %p183 = scmp.ne.s32.totalorder %s175, %s177
      %p184 = scmp.eq.s32.totalorder %s31, 1
      %p185 = por %p183, %p184
      %p186 = scmp.ne.s32.totalorder %s177, %s178
      %p187 = scmp.eq.s32.totalorder %s31, 0
      %p188 = por %p186, %p187
      %p189 = scmp.ne.s32.totalorder %s177, %s178
      %p190 = scmp.eq.s32.totalorder %s32, 1
      %p191 = por %p189, %p190
      %p193 = scmp.ne.s32.totalorder %s178, %s192
      %p194 = scmp.eq.s32.totalorder %s32, 0
      %p195 = por %p193, %p194
      %s197 = sadd.s32 %s196, 1
      %p200 = scmp.eq.s32.totalorder %s26, 1
      %p201 = scmp.ne.s32.totalorder %s196, %s198
      %p202 = scmp.eq.s32.totalorder %s26, 0
      %p203 = por %p201, %p202
      %p204 = scmp.ne.s32.totalorder %s196, %s198
      %p205 = scmp.eq.s32.totalorder %s31, 1
      %p206 = por %p204, %p205
      %p207 = scmp.ne.s32.totalorder %s198, %s199
      %p208 = scmp.eq.s32.totalorder %s31, 0
      %p209 = por %p207, %p208
      %p210 = scmp.ne.s32.totalorder %s198, %s199
      %p211 = scmp.eq.s32.totalorder %s32, 1
      %p212 = por %p210, %p211
      %p214 = scmp.ne.s32.totalorder %s199, %s213
      %p215 = scmp.eq.s32.totalorder %s32, 0
      %p216 = por %p214, %p215
      %s217 = ssub.s32 %s33, %s45
      %s218 = ssub.s32 %s34, %s41
      %s219 = sor.u32 %s217, %s218
      %p220 = scmp.eq.s32.totalorder %s219, 0
      %s222 = sadd.s32 %s221, 1
      %s223 = scalar_select %p220, %s221, %s222
      %p226 = pneg %p220
      %p227 = scmp.eq.s32.totalorder %s26, 1
      %p228 = por %p226, %p227
      %p229 = scmp.ne.s32.totalorder %s221, %s224
      %p230 = scmp.eq.s32.totalorder %s26, 0
      %p231 = por %p229, %p230
      %p232 = scmp.ne.s32.totalorder %s221, %s224
      %p233 = scmp.eq.s32.totalorder %s31, 1
      %p234 = por %p232, %p233
      %p235 = scmp.ne.s32.totalorder %s224, %s225
      %p236 = scmp.eq.s32.totalorder %s31, 0
      %p237 = por %p235, %p236
      %p238 = scmp.ne.s32.totalorder %s224, %s225
      %p239 = scmp.eq.s32.totalorder %s32, 1
      %p240 = por %p238, %p239
      %p242 = scmp.ne.s32.totalorder %s225, %s241
      %p243 = scmp.eq.s32.totalorder %s32, 0
      %p244 = por %p242, %p243
      %p245 = scmp.le.s32.totalorder 1, %s26
      %p246 = scmp.lt.s32.totalorder %s26, 3
      %p247 = pnand %p245, %p246
      %p248 = pneg %p247
      // Predicated region
      $region9: #{tpu_custom_call.1} parent=5 // pred_check
        _
      $region10: #{tpu_custom_call.1} parent=5 // pred_check_branch
        %250 = sbr.rel (%p247) target = $region12
      $region11: #{tpu_custom_call.1} parent=5 // pred_region
        %s251 = ssub.s32 %s26, 1
        // Predicated region
        $region13: #{tpu_custom_call.1} parent=11 // pred_check
          %p252 = pneg %p167
        $region14: #{tpu_custom_call.1} parent=11 // pred_check_branch
          %254 = sbr.rel (%p252) target = $region16
        $region15: #{tpu_custom_call.1} parent=11 // pred_region
          %256 = vsyncadd [#allocation9], 0
          %s257 = sshll.u32 %s4, 4
          %s258 = int_to_ptr.hbm [resolvable:$true] %s257
          %s259 = sshll.u32 [#allocation10], 4
          %s260 = int_to_ptr.vmem [resolvable:$true] %s259
          %265 = dma.hbm_to_vmem [thread:$0]  %s258, 768, %s260, [#allocation9], 64, 64, 4
        $region16: #{tpu_custom_call.1} parent=11 // pred_fallthru
          _
        // Predicated region
        $region17: #{tpu_custom_call.1} parent=11 // pred_check
          %p266 = pneg %p188
        $region18: #{tpu_custom_call.1} parent=11 // pred_check_branch
          %268 = sbr.rel (%p266) target = $region20
        $region19: #{tpu_custom_call.1} parent=11 // pred_region
          %270 = vsyncadd [#allocation12], 0
          %s271 = sshll.u32 %s5, 4
          %s272 = int_to_ptr.hbm [resolvable:$true] %s271
          %s273 = sshll.u32 [#allocation11], 4
          %s274 = int_to_ptr.vmem [resolvable:$true] %s273
          %279 = dma.hbm_to_vmem [thread:$0]  %s272, 256, %s274, [#allocation12], 64, 64, 4
        $region20: #{tpu_custom_call.1} parent=11 // pred_fallthru
          _
        // Predicated region
        $region21: #{tpu_custom_call.1} parent=11 // pred_check
          %p280 = pneg %p209
        $region22: #{tpu_custom_call.1} parent=11 // pred_check_branch
          %282 = sbr.rel (%p280) target = $region24
        $region23: #{tpu_custom_call.1} parent=11 // pred_region
          _
        $region24: #{tpu_custom_call.1} parent=11 // pred_fallthru
          _
      $region12: #{tpu_custom_call.1} parent=5 // pred_fallthru
        _
      %p283 = scmp.lt.s32.totalorder %s26, 2
      // Predicated region
      $region25: #{tpu_custom_call.1} parent=5 // pred_check
        %p284 = pneg %p283
      $region26: #{tpu_custom_call.1} parent=5 // pred_check_branch
        %286 = sbr.rel (%p284) target = $region28
      $region27: #{tpu_custom_call.1} parent=5 // pred_region
        // Predicated region
        $region29: #{tpu_custom_call.1} parent=27 // pred_check
          %p287 = pneg %p60
        $region30: #{tpu_custom_call.1} parent=27 // pred_check_branch
          %289 = sbr.rel (%p287) target = $region32
        $region31: #{tpu_custom_call.1} parent=27 // pred_region
          %s290 = sand.u32 %s50, 1
          %s291 = scalar_lea.sflag [#allocation3], %s290
          %s292 = sand.u32 %s50, 1
          %s293 = smul.addr %s292, 8
          %s294 = scalar_lea.vmem [#allocation2], %s293
          %296 = vsyncadd %s291, 0
          %s297 = sadd.s32 %s34, %s33
          %s298 = smul.addr %s297, 8
          %s299 = scalar_lea.hbm %s0, %s298
          %s301 = sshll.u32 %s299, 4
          %s302 = int_to_ptr.hbm [resolvable:$true] %s301
          %s303 = sshll.u32 %s294, 4
          %s304 = int_to_ptr.vmem [resolvable:$true] %s303
          %306 = dma.hbm_to_vmem [thread:$0]  %s302, 128, %s304, %s291
        $region32: #{tpu_custom_call.1} parent=27 // pred_fallthru
          _
        // Predicated region
        $region33: #{tpu_custom_call.1} parent=27 // pred_check
          %p307 = pneg %p86
        $region34: #{tpu_custom_call.1} parent=27 // pred_check_branch
          %309 = sbr.rel (%p307) target = $region36
        $region35: #{tpu_custom_call.1} parent=27 // pred_region
          %s310 = sand.u32 %s26, 1
          %s311 = scalar_lea.sflag [#allocation6], %s310
          %s312 = sand.u32 %s76, 1
          %s313 = smul.addr %s312, 8
          %s314 = scalar_lea.vmem [#allocation5], %s313
          %316 = vsyncadd %s311, 0
          %s317 = smul.addr %s33, 8
          %s318 = scalar_lea.hbm %s1, %s317
          %s320 = sshll.u32 %s318, 4
          %s321 = int_to_ptr.hbm [resolvable:$true] %s320
          %s322 = sshll.u32 %s314, 4
          %s323 = int_to_ptr.vmem [resolvable:$true] %s322
          %325 = dma.hbm_to_vmem [thread:$0]  %s321, 128, %s323, %s311
        $region36: #{tpu_custom_call.1} parent=27 // pred_fallthru
          _
        // Predicated region
        $region37: #{tpu_custom_call.1} parent=27 // pred_check
          %p326 = pneg %p112
        $region38: #{tpu_custom_call.1} parent=27 // pred_check_branch
          %328 = sbr.rel (%p326) target = $region40
        $region39: #{tpu_custom_call.1} parent=27 // pred_region
          %s329 = sand.u32 %s26, 1
          %s330 = scalar_lea.sflag [#allocation6], %s329
          %s331 = sand.u32 %s102, 1
          %s332 = smul.addr %s331, 8
          %s333 = scalar_lea.vmem [#allocation7], %s332
          %335 = vsyncadd %s330, 0
          %s336 = smul.addr %s33, 8
          %s337 = scalar_lea.hbm %s2, %s336
          %s339 = sshll.u32 %s337, 4
          %s340 = int_to_ptr.hbm [resolvable:$true] %s339
          %s341 = sshll.u32 %s333, 4
          %s342 = int_to_ptr.vmem [resolvable:$true] %s341
          %344 = dma.hbm_to_vmem [thread:$0]  %s340, 128, %s342, %s330
        $region40: #{tpu_custom_call.1} parent=27 // pred_fallthru
          _
        // Predicated region
        $region41: #{tpu_custom_call.1} parent=27 // pred_check
          %p345 = pneg %p140
        $region42: #{tpu_custom_call.1} parent=27 // pred_check_branch
          %347 = sbr.rel (%p345) target = $region44
        $region43: #{tpu_custom_call.1} parent=27 // pred_region
          %s348 = sand.u32 %s26, 1
          %s349 = scalar_lea.sflag [#allocation9], %s348
          %s350 = sand.u32 %s130, 1
          %s351 = smul.addr %s350, 2
          %s352 = scalar_lea.vmem [#allocation8], %s351
          %354 = vsyncadd %s349, 0
          %s355 = sadd.s32 %s34, %s33
          %s356 = smul.addr %s355, 2
          %s357 = scalar_lea.hbm %s3, %s356
          %s359 = sshll.u32 %s357, 4
          %s360 = int_to_ptr.hbm [resolvable:$true] %s359
          %s361 = sshll.u32 %s352, 4
          %s362 = int_to_ptr.vmem [resolvable:$true] %s361
          %364 = dma.hbm_to_vmem [thread:$0]  %s360, 32, %s362, %s349
        $region44: #{tpu_custom_call.1} parent=27 // pred_fallthru
          _
      $region28: #{tpu_custom_call.1} parent=5 // pred_fallthru
        _
      %p365 = scmp.le.s32.totalorder 1, %s26
      %p366 = scmp.lt.s32.totalorder %s26, 3
      %p367 = pnand %p365, %p366
      %p368 = pneg %p367
      // Predicated region
      $region45: #{tpu_custom_call.1} parent=5 // pred_check
        _
      $region46: #{tpu_custom_call.1} parent=5 // pred_check_branch
        %370 = sbr.rel (%p367) target = $region48
      $region47: #{tpu_custom_call.1} parent=5 // pred_region
        %s371 = ssub.s32 %s26, 1
        %s372 = sand.u32 %s53, 1
        %s373 = scalar_lea.sflag [#allocation3], %s372
        %s374 = sand.u32 %s53, 1
        %s375 = smul.addr %s374, 8
        %s376 = scalar_lea.vmem [#allocation2], %s375
        // Predicated region
        $region49: #{tpu_custom_call.1} parent=47 // pred_check
          %p377 = pneg %p66
        $region50: #{tpu_custom_call.1} parent=47 // pred_check_branch
          %379 = sbr.rel (%p377) target = $region52
        $region51: #{tpu_custom_call.1} parent=47 // pred_region
          %381 = dma.done %s373, 128
        $region52: #{tpu_custom_call.1} parent=47 // pred_fallthru
          _
        %s382 = sand.u32 %s31, 1
        %s383 = scalar_lea.sflag [#allocation6], %s382
        %s384 = sand.u32 %s79, 1
        %s385 = smul.addr %s384, 8
        %s386 = scalar_lea.vmem [#allocation5], %s385
        // Predicated region
        $region53: #{tpu_custom_call.1} parent=47 // pred_check
          %p387 = pneg %p92
        $region54: #{tpu_custom_call.1} parent=47 // pred_check_branch
          %389 = sbr.rel (%p387) target = $region56
        $region55: #{tpu_custom_call.1} parent=47 // pred_region
          %391 = dma.done %s383, 128
        $region56: #{tpu_custom_call.1} parent=47 // pred_fallthru
          _
        %s392 = sand.u32 %s31, 1
        %s393 = scalar_lea.sflag [#allocation6], %s392
        %s394 = sand.u32 %s105, 1
        %s395 = smul.addr %s394, 8
        %s396 = scalar_lea.vmem [#allocation7], %s395
        // Predicated region
        $region57: #{tpu_custom_call.1} parent=47 // pred_check
          %p397 = pneg %p118
        $region58: #{tpu_custom_call.1} parent=47 // pred_check_branch
          %399 = sbr.rel (%p397) target = $region60
        $region59: #{tpu_custom_call.1} parent=47 // pred_region
          %401 = dma.done %s393, 128
        $region60: #{tpu_custom_call.1} parent=47 // pred_fallthru
          _
        %s402 = sand.u32 %s31, 1
        %s403 = scalar_lea.sflag [#allocation9], %s402
        %s404 = sand.u32 %s133, 1
        %s405 = smul.addr %s404, 2
        %s406 = scalar_lea.vmem [#allocation8], %s405
        // Predicated region
        $region61: #{tpu_custom_call.1} parent=47 // pred_check
          %p407 = pneg %p146
        $region62: #{tpu_custom_call.1} parent=47 // pred_check_branch
          %409 = sbr.rel (%p407) target = $region64
        $region63: #{tpu_custom_call.1} parent=47 // pred_region
          %411 = dma.done %s403, 32
        $region64: #{tpu_custom_call.1} parent=47 // pred_fallthru
          _
        // Predicated region
        $region65: #{tpu_custom_call.1} parent=47 // pred_check
          %p412 = pneg %p167
        $region66: #{tpu_custom_call.1} parent=47 // pred_check_branch
          %414 = sbr.rel (%p412) target = $region68
        $region67: #{tpu_custom_call.1} parent=47 // pred_region
          %416 = dma.done [#allocation9], 768
        $region68: #{tpu_custom_call.1} parent=47 // pred_fallthru
          _
        // Predicated region
        $region69: #{tpu_custom_call.1} parent=47 // pred_check
          %p417 = pneg %p188
        $region70: #{tpu_custom_call.1} parent=47 // pred_check_branch
          %419 = sbr.rel (%p417) target = $region72
        $region71: #{tpu_custom_call.1} parent=47 // pred_region
          %421 = dma.done [#allocation12], 256
        $region72: #{tpu_custom_call.1} parent=47 // pred_fallthru
          _
        %s422 = sand.u32 %s53, 1
        %s423 = scalar_lea.sflag [#allocation3], %s422
        %s424 = sand.u32 %s53, 1
        %s425 = smul.addr %s424, 8
        %s426 = scalar_lea.vmem [#allocation2], %s425
        %p427 = pneg %p66
        %p428 = pneg %p63
        %s429 = sand.u32 %s31, 1
        %s430 = scalar_lea.sflag [#allocation6], %s429
        %s431 = sand.u32 %s79, 1
        %s432 = smul.addr %s431, 8
        %s433 = scalar_lea.vmem [#allocation5], %s432
        %p434 = pneg %p92
        %p435 = pneg %p89
        %s436 = sand.u32 %s31, 1
        %s437 = scalar_lea.sflag [#allocation6], %s436
        %s438 = sand.u32 %s105, 1
        %s439 = smul.addr %s438, 8
        %s440 = scalar_lea.vmem [#allocation7], %s439
        %p441 = pneg %p118
        %p442 = pneg %p115
        %s443 = sand.u32 %s31, 1
        %s444 = scalar_lea.sflag [#allocation9], %s443
        %s445 = sand.u32 %s133, 1
        %s446 = smul.addr %s445, 2
        %s447 = scalar_lea.vmem [#allocation8], %s446
        %p448 = pneg %p146
        %p449 = pneg %p143
        %p450 = pneg %p167
        %p451 = pneg %p164
        %p452 = pneg %p188
        %p453 = pneg %p185
        %p454 = pneg %p209
        %p455 = pneg %p206
        %p456 = pneg %p237
        %p457 = pneg %p234
        %s458 = sand.u32 %s224, 1
        %s459 = scalar_lea.sflag [#allocation4], %s458
        %s460 = sand.u32 %s224, 1
        %s461 = smul.addr %s460, 8
        %s462 = scalar_lea.vmem [#allocation13], %s461
        %v464 = vld [vmem:[%s376] sm:$0xff]
        %v465 = vpack.c.bf16 %v464, %v464
        %v466 = vld [vmem:[%s386] sm:$0xff]
        %v467 = vpack.c.bf16 %v466, %v466
        %v468 = vld [vmem:[%s396] sm:$0xff]
        %v469 = vpack.c.bf16 %v468, %v468
        %v470 = vld [vmem:[#allocation10] sm:$0xf]
        %v471 = vld [vmem:[#allocation10 + $0x4] sm:$0xf]
        %v472 = vld [vmem:[#allocation10 + $0x8] sm:$0xf]
        %v473 = vld [vmem:[#allocation10 + $0xc] sm:$0xf]
        %v478 = vunpack.c.l.b16 %v470
        %v479 = vunpack.c.l.b16 %v471
        %v480 = vunpack.c.l.b16 %v472
        %v481 = vunpack.c.l.b16 %v473
        %v482 = vpack.c.b16 %v479, %v478
        %v483 = vpack.c.b16 %v481, %v480
        %vm486 = vcmask 261120
        %v488 = vsel %vm486, %v465, 0
        %490 = vmatpush.bf16.msra.mxu0 0
        %491 = vmatpush.bf16.msra.mxu0 0
        %492 = vmatpush.bf16.msra.mxu0 0
        %493 = vmatpush.bf16.msra.mxu0 0
        %494 = vmatpush.bf16.msra.mxu0 0
        %495 = vmatpush.bf16.msra.mxu0 0
        %496 = vmatpush.bf16.msra.mxu0 %v483
        %497 = vmatpush.bf16.msra.mxu0 %v482
        %498 = vmatmul.bf16.gmra.mxu0 %v488
        %v499 = vpop.f32.mrf.mxu0
        %v500 = vadd.f32 0.0, %v499
        %v501 = vpop.f32.mrf.mxu0
        %502 = vdwg.mxu0
        %v503 = vmul.f32 %v500, 0.35355338
        %s504 = scalar_lea.vmem [#allocation10], 16
        %v505 = vld [vmem:[%s504] sm:$0xf]
        %v506 = vld [vmem:[%s504 + $0x4] sm:$0xf]
        %v507 = vld [vmem:[%s504 + $0x8] sm:$0xf]
        %v508 = vld [vmem:[%s504 + $0xc] sm:$0xf]
        %v513 = vunpack.c.l.b16 %v505
        %v514 = vunpack.c.l.b16 %v506
        %v515 = vunpack.c.l.b16 %v507
        %v516 = vunpack.c.l.b16 %v508
        %v517 = vpack.c.b16 %v514, %v513
        %v518 = vpack.c.b16 %v516, %v515
        %v522 = vsel %vm486, %v467, 0
        %524 = vmatpush.bf16.msra.mxu0 0
        %525 = vmatpush.bf16.msra.mxu0 0
        %526 = vmatpush.bf16.msra.mxu0 0
        %527 = vmatpush.bf16.msra.mxu0 0
        %528 = vmatpush.bf16.msra.mxu0 0
        %529 = vmatpush.bf16.msra.mxu0 0
        %530 = vmatpush.bf16.msra.mxu0 %v518
        %531 = vmatpush.bf16.msra.mxu0 %v517
        %532 = vmatmul.bf16.gmra.mxu0 %v522
        %v533 = vpop.f32.mrf.mxu0
        %v534 = vadd.f32 0.0, %v533
        %v535 = vpop.f32.mrf.mxu0
        %536 = vdwg.mxu0
        %s537 = scalar_lea.vmem [#allocation10], 32
        %v538 = vld [vmem:[%s537] sm:$0xf]
        %v539 = vld [vmem:[%s537 + $0x4] sm:$0xf]
        %v540 = vld [vmem:[%s537 + $0x8] sm:$0xf]
        %v541 = vld [vmem:[%s537 + $0xc] sm:$0xf]
        %v546 = vunpack.c.l.b16 %v538
        %v547 = vunpack.c.l.b16 %v539
        %v548 = vunpack.c.l.b16 %v540
        %v549 = vunpack.c.l.b16 %v541
        %v550 = vpack.c.b16 %v547, %v546
        %v551 = vpack.c.b16 %v549, %v548
        %v555 = vsel %vm486, %v469, 0
        %557 = vmatpush.bf16.msra.mxu0 0
        %558 = vmatpush.bf16.msra.mxu0 0
        %559 = vmatpush.bf16.msra.mxu0 0
        %560 = vmatpush.bf16.msra.mxu0 0
        %561 = vmatpush.bf16.msra.mxu0 0
        %562 = vmatpush.bf16.msra.mxu0 0
        %563 = vmatpush.bf16.msra.mxu0 %v551
        %564 = vmatpush.bf16.msra.mxu0 %v550
        %565 = vmatmul.bf16.gmra.mxu0 %v555
        %v566 = vpop.f32.mrf.mxu0
        %v567 = vadd.f32 0.0, %v566
        %v568 = vpop.f32.mrf.mxu0
        %569 = vdwg.mxu0
        %v570 = vld [vmem:[%s406] sm:$0x3]
        %v571 = vunpack.c.0.s8 %v570
        %v572 = vcvt.s32.f32 %v571
        %vm573 = vcmp.eq.f32.partialorder %v572, 0.0
        %v574 = vsel %vm573, -1e+09, 0.0
        %v575 = vpack.c.bf16 %v503, %v503
        %v576 = vpack.c.bf16 %v534, %v534
        %v577 = vpack.c.bf16 %v567, %v567
        %v578 = vld [vmem:[#allocation11] sm:$0xf]
        %v579 = vld [vmem:[#allocation11 + $0x4] sm:$0xf]
        %v580 = vld [vmem:[#allocation11 + $0x8] sm:$0xf]
        %v581 = vld [vmem:[#allocation11 + $0xc] sm:$0xf]
        %vm582 = vcmask 64512
        %v584 = vsel %vm582, %v575, 0
        %v587 = vsel %vm582, %v576, 0
        %589 = vmatpush.bf16.xpose.msra.mxu0 0
        %590 = vmatpush.bf16.xpose.msra.mxu0 0
        %591 = vmatpush.bf16.xpose.msra.mxu0 0
        %592 = vmatpush.bf16.xpose.msra.mxu0 0
        %593 = vmatpush.bf16.xpose.msra.mxu0 0
        %594 = vmatpush.bf16.xpose.msra.mxu0 0
        %595 = vmatpush.bf16.xpose.msra.mxu0 0
        %596 = vmatpush.bf16.xpose.msra.mxu0 %v587
        %597 = vmatmul.bf16.gmra.mxu0 %v584
        %v598 = vpop.f32.mrf.mxu0
        %v599 = vadd.f32 %v574, %v598
        %v600 = vpop.f32.mrf.mxu0
        %601 = vdwg.mxu0
        %v602 = vsel %vm582, %v599, -inf
        %603 = vmax.xlane.f32.xlu0 %v602
        %v604 = vpop.xlane.xlu0 %603
        %v605 = vsub.f32 %v599, %v604
        %v606 = vmul.f32 %v605, 1.442695
        %v607 = vpow.pop %v606
        %v608 = vsel %vm582, %v607, 0.0
        %609 = vadd.xlane.f32.xlu0 %v608
        %v610 = vpop.xlane.xlu0 %609
        %v611 = vrcp.pop %v610
        %v612 = vmul.f32 %v607, %v611
        %v613 = vpack.c.bf16 %v612, %v612
        %v615 = vsel %vm582, %v613, 0
        %vm617 = vcmask 1043456
        %v619 = vsel %vm617, %v577, 0
        %621 = vmatpush.bf16.msra.mxu0 0
        %622 = vmatpush.bf16.msra.mxu0 0
        %623 = vmatpush.bf16.msra.mxu0 0
        %624 = vmatpush.bf16.msra.mxu0 0
        %625 = vmatpush.bf16.msra.mxu0 0
        %626 = vmatpush.bf16.msra.mxu0 0
        %627 = vmatpush.bf16.msra.mxu0 0
        %628 = vmatpush.bf16.msra.mxu0 %v619
        %629 = vmatmul.bf16.gmra.mxu0 %v615
        %v630 = vpop.f32.mrf.mxu0
        %v631 = vadd.f32 0.0, %v630
        %v632 = vpop.f32.mrf.mxu0
        %633 = vdwg.mxu0
        %v634 = vpack.c.bf16 %v631, %v631
        %v636 = vunpack.c.l.b16 %v575
        %v637 = vpack.c.b16 %v636, %v636
        %638 = vrot.lane.b32.xlu0 %v637, 120
        %v639 = vpop.permute.xlu0 %638
        %v641 = vunpack.c.l.b16 %v576
        %v642 = vpack.c.b16 %v641, %v641
        %643 = vrot.lane.b32.xlu0 %v642, 120
        %v644 = vpop.permute.xlu0 %643
        %v646 = vsel %vm582, %v639, 0
        %v649 = vsel %vm582, %v644, 0
        %651 = vmatpush.bf16.xpose.msra.mxu0 0
        %652 = vmatpush.bf16.xpose.msra.mxu0 0
        %653 = vmatpush.bf16.xpose.msra.mxu0 0
        %654 = vmatpush.bf16.xpose.msra.mxu0 0
        %655 = vmatpush.bf16.xpose.msra.mxu0 0
        %656 = vmatpush.bf16.xpose.msra.mxu0 0
        %657 = vmatpush.bf16.xpose.msra.mxu0 0
        %658 = vmatpush.bf16.xpose.msra.mxu0 %v649
        %659 = vmatmul.bf16.gmra.mxu0 %v646
        %v660 = vpop.f32.mrf.mxu0
        %v661 = vadd.f32 %v574, %v660
        %v662 = vpop.f32.mrf.mxu0
        %663 = vdwg.mxu0
        %v664 = vsel %vm582, %v661, -inf
        %665 = vmax.xlane.f32.xlu0 %v664
        %v666 = vpop.xlane.xlu0 %665
        %v667 = vsub.f32 %v661, %v666
        %v668 = vmul.f32 %v667, 1.442695
        %v669 = vpow.pop %v668
        %v670 = vsel %vm582, %v669, 0.0
        %671 = vadd.xlane.f32.xlu0 %v670
        %v672 = vpop.xlane.xlu0 %671
        %v673 = vrcp.pop %v672
        %v674 = vmul.f32 %v669, %v673
        %v675 = vpack.c.bf16 %v674, %v674
        %v677 = vunpack.c.l.b16 %v577
        %v678 = vpack.c.b16 %v677, %v677
        %679 = vrot.lane.b32.xlu0 %v678, 120
        %v680 = vpop.permute.xlu0 %679
        %v682 = vsel %vm582, %v675, 0
        %v685 = vsel %vm617, %v680, 0
        %687 = vmatpush.bf16.msra.mxu0 0
        %688 = vmatpush.bf16.msra.mxu0 0
        %689 = vmatpush.bf16.msra.mxu0 0
        %690 = vmatpush.bf16.msra.mxu0 0
        %691 = vmatpush.bf16.msra.mxu0 0
        %692 = vmatpush.bf16.msra.mxu0 0
        %693 = vmatpush.bf16.msra.mxu0 0
        %694 = vmatpush.bf16.msra.mxu0 %v685
        %695 = vmatmul.bf16.gmra.mxu0 %v682
        %v696 = vpop.f32.mrf.mxu0
        %v697 = vadd.f32 0.0, %v696
        %v698 = vpop.f32.mrf.mxu0
        %699 = vdwg.mxu0
        %v700 = vpack.c.bf16 %v697, %v697
        %v702 = vsel %vm582, %v700, 0
        %v705 = vsel %vm617, %v579, 0
        %707 = vmatpush.bf16.msra.mxu0 0
        %708 = vmatpush.bf16.msra.mxu0 0
        %709 = vmatpush.bf16.msra.mxu0 0
        %710 = vmatpush.bf16.msra.mxu0 0
        %711 = vmatpush.bf16.msra.mxu0 0
        %712 = vmatpush.bf16.msra.mxu0 0
        %713 = vmatpush.bf16.msra.mxu0 0
        %714 = vmatpush.bf16.msra.mxu0 %v705
        %715 = vmatmul.bf16.gmra.mxu0 %v702
        %v716 = vpop.f32.mrf.mxu0
        %v717 = vadd.f32 0.0, %v716
        %v718 = vpop.f32.mrf.mxu0
        %719 = vdwg.mxu0
        %v721 = vsel %vm582, %v634, 0
        %v724 = vsel %vm617, %v578, 0
        %726 = vmatpush.bf16.msra.mxu0 0
        %727 = vmatpush.bf16.msra.mxu0 0
        %728 = vmatpush.bf16.msra.mxu0 0
        %729 = vmatpush.bf16.msra.mxu0 0
        %730 = vmatpush.bf16.msra.mxu0 0
        %731 = vmatpush.bf16.msra.mxu0 0
        %732 = vmatpush.bf16.msra.mxu0 0
        %733 = vmatpush.bf16.msra.mxu0 %v724
        %734 = vmatmul.bf16.gmra.mxu0 %v721
        %v735 = vpop.f32.mrf.mxu0
        %v736 = vadd.f32 %v717, %v735
        %v737 = vpop.f32.mrf.mxu0
        %738 = vdwg.mxu0
        %739 = vrot.lane.b32.xlu0 %v637, 112
        %v740 = vpop.permute.xlu0 %739
        %741 = vrot.lane.b32.xlu0 %v642, 112
        %v742 = vpop.permute.xlu0 %741
        %v744 = vsel %vm582, %v740, 0
        %v747 = vsel %vm582, %v742, 0
        %749 = vmatpush.bf16.xpose.msra.mxu0 0
        %750 = vmatpush.bf16.xpose.msra.mxu0 0
        %751 = vmatpush.bf16.xpose.msra.mxu0 0
        %752 = vmatpush.bf16.xpose.msra.mxu0 0
        %753 = vmatpush.bf16.xpose.msra.mxu0 0
        %754 = vmatpush.bf16.xpose.msra.mxu0 0
        %755 = vmatpush.bf16.xpose.msra.mxu0 0
        %756 = vmatpush.bf16.xpose.msra.mxu0 %v747
        %757 = vmatmul.bf16.gmra.mxu0 %v744
        %v758 = vpop.f32.mrf.mxu0
        %v759 = vadd.f32 %v574, %v758
        %v760 = vpop.f32.mrf.mxu0
        %761 = vdwg.mxu0
        %v762 = vsel %vm582, %v759, -inf
        %763 = vmax.xlane.f32.xlu0 %v762
        %v764 = vpop.xlane.xlu0 %763
        %v765 = vsub.f32 %v759, %v764
        %v766 = vmul.f32 %v765, 1.442695
        %v767 = vpow.pop %v766
        %v768 = vsel %vm582, %v767, 0.0
        %769 = vadd.xlane.f32.xlu0 %v768
        %v770 = vpop.xlane.xlu0 %769
        %v771 = vrcp.pop %v770
        %v772 = vmul.f32 %v767, %v771
        %v773 = vpack.c.bf16 %v772, %v772
        %774 = vrot.lane.b32.xlu0 %v678, 112
        %v775 = vpop.permute.xlu0 %774
        %v777 = vsel %vm582, %v773, 0
        %v780 = vsel %vm617, %v775, 0
        %782 = vmatpush.bf16.msra.mxu0 0
        %783 = vmatpush.bf16.msra.mxu0 0
        %784 = vmatpush.bf16.msra.mxu0 0
        %785 = vmatpush.bf16.msra.mxu0 0
        %786 = vmatpush.bf16.msra.mxu0 0
        %787 = vmatpush.bf16.msra.mxu0 0
        %788 = vmatpush.bf16.msra.mxu0 0
        %789 = vmatpush.bf16.msra.mxu0 %v780
        %790 = vmatmul.bf16.gmra.mxu0 %v777
        %v791 = vpop.f32.mrf.mxu0
        %v792 = vadd.f32 0.0, %v791
        %v793 = vpop.f32.mrf.mxu0
        %794 = vdwg.mxu0
        %v795 = vpack.c.bf16 %v792, %v792
        %v797 = vsel %vm582, %v795, 0
        %v800 = vsel %vm617, %v580, 0
        %802 = vmatpush.bf16.msra.mxu0 0
        %803 = vmatpush.bf16.msra.mxu0 0
        %804 = vmatpush.bf16.msra.mxu0 0
        %805 = vmatpush.bf16.msra.mxu0 0
        %806 = vmatpush.bf16.msra.mxu0 0
        %807 = vmatpush.bf16.msra.mxu0 0
        %808 = vmatpush.bf16.msra.mxu0 0
        %809 = vmatpush.bf16.msra.mxu0 %v800
        %810 = vmatmul.bf16.gmra.mxu0 %v797
        %v811 = vpop.f32.mrf.mxu0
        %v812 = vadd.f32 0.0, %v811
        %v813 = vpop.f32.mrf.mxu0
        %814 = vdwg.mxu0
        %v815 = vadd.f32 %v736, %v812
        %816 = vrot.lane.b32.xlu0 %v637, 104
        %v817 = vpop.permute.xlu0 %816
        %818 = vrot.lane.b32.xlu0 %v642, 104
        %v819 = vpop.permute.xlu0 %818
        %v821 = vsel %vm582, %v817, 0
        %v824 = vsel %vm582, %v819, 0
        %826 = vmatpush.bf16.xpose.msra.mxu0 0
        %827 = vmatpush.bf16.xpose.msra.mxu0 0
        %828 = vmatpush.bf16.xpose.msra.mxu0 0
        %829 = vmatpush.bf16.xpose.msra.mxu0 0
        %830 = vmatpush.bf16.xpose.msra.mxu0 0
        %831 = vmatpush.bf16.xpose.msra.mxu0 0
        %832 = vmatpush.bf16.xpose.msra.mxu0 0
        %833 = vmatpush.bf16.xpose.msra.mxu0 %v824
        %834 = vmatmul.bf16.gmra.mxu0 %v821
        %v835 = vpop.f32.mrf.mxu0
        %v836 = vadd.f32 %v574, %v835
        %v837 = vpop.f32.mrf.mxu0
        %838 = vdwg.mxu0
        %v839 = vsel %vm582, %v836, -inf
        %840 = vmax.xlane.f32.xlu0 %v839
        %v841 = vpop.xlane.xlu0 %840
        %v842 = vsub.f32 %v836, %v841
        %v843 = vmul.f32 %v842, 1.442695
        %v844 = vpow.pop %v843
        %v845 = vsel %vm582, %v844, 0.0
        %846 = vadd.xlane.f32.xlu0 %v845
        %v847 = vpop.xlane.xlu0 %846
        %v848 = vrcp.pop %v847
        %v849 = vmul.f32 %v844, %v848
        %v850 = vpack.c.bf16 %v849, %v849
        %851 = vrot.lane.b32.xlu0 %v678, 104
        %v852 = vpop.permute.xlu0 %851
        %v854 = vsel %vm582, %v850, 0
        %v857 = vsel %vm617, %v852, 0
        %859 = vmatpush.bf16.msra.mxu0 0
        %860 = vmatpush.bf16.msra.mxu0 0
        %861 = vmatpush.bf16.msra.mxu0 0
        %862 = vmatpush.bf16.msra.mxu0 0
        %863 = vmatpush.bf16.msra.mxu0 0
        %864 = vmatpush.bf16.msra.mxu0 0
        %865 = vmatpush.bf16.msra.mxu0 0
        %866 = vmatpush.bf16.msra.mxu0 %v857
        %867 = vmatmul.bf16.gmra.mxu0 %v854
        %v868 = vpop.f32.mrf.mxu0
        %v869 = vadd.f32 0.0, %v868
        %v870 = vpop.f32.mrf.mxu0
        %871 = vdwg.mxu0
        %v872 = vpack.c.bf16 %v869, %v869
        %v874 = vsel %vm582, %v872, 0
        %v877 = vsel %vm617, %v581, 0
        %879 = vmatpush.bf16.msra.mxu0 0
        %880 = vmatpush.bf16.msra.mxu0 0
        %881 = vmatpush.bf16.msra.mxu0 0
        %882 = vmatpush.bf16.msra.mxu0 0
        %883 = vmatpush.bf16.msra.mxu0 0
        %884 = vmatpush.bf16.msra.mxu0 0
        %885 = vmatpush.bf16.msra.mxu0 0
        %886 = vmatpush.bf16.msra.mxu0 %v877
        %887 = vmatmul.bf16.gmra.mxu0 %v874
        %v888 = vpop.f32.mrf.mxu0
        %v889 = vadd.f32 0.0, %v888
        %v890 = vpop.f32.mrf.mxu0
        %891 = vdwg.mxu0
        %v892 = vadd.f32 %v815, %v889
        %v893 = vld [vmem:[%s6] sm:$0x1]
        %v895 = vperm.slane %v893, 0
        %v897 = vadd.f32 %v892, %v895
        %898 = vst.msk [vmem:[%s462] sm:$0xff] %vm486, %v897
        %s899 = sand.u32 %s224, 1
        %s900 = scalar_lea.sflag [#allocation4], %s899
        %s901 = sand.u32 %s224, 1
        %s902 = smul.addr %s901, 8
        %s903 = scalar_lea.vmem [#allocation13], %s902
        // Predicated region
        $region73: #{tpu_custom_call.1} parent=47 // pred_check
          %p904 = pneg %p234
        $region74: #{tpu_custom_call.1} parent=47 // pred_check_branch
          %906 = sbr.rel (%p904) target = $region76
        $region75: #{tpu_custom_call.1} parent=47 // pred_region
          %908 = vsyncadd %s900, 0
          %s909 = sadd.s32 %s36, %s35
          %s910 = smul.addr %s909, 8
          %s911 = scalar_lea.hbm %s7, %s910
          %s913 = sshll.u32 %s903, 4
          %s914 = int_to_ptr.vmem [resolvable:$true] %s913
          %s915 = sshll.u32 %s911, 4
          %s916 = int_to_ptr.hbm [resolvable:$true] %s915
          %918 = dma.vmem_to_hbm [thread:$0]  %s914, 128, %s916, %s900
        $region76: #{tpu_custom_call.1} parent=47 // pred_fallthru
          _
      $region48: #{tpu_custom_call.1} parent=5 // pred_fallthru
        _
      %p919 = scmp.le.s32.totalorder 2, %s26
      // Predicated region
      $region77: #{tpu_custom_call.1} parent=5 // pred_check
        %p920 = pneg %p919
      $region78: #{tpu_custom_call.1} parent=5 // pred_check_branch
        %922 = sbr.rel (%p920) target = $region80
      $region79: #{tpu_custom_call.1} parent=5 // pred_region
        %s923 = ssub.s32 %s26, 2
        // Predicated region
        $region81: #{tpu_custom_call.1} parent=79 // pred_check
          %p924 = pneg %p240
        $region82: #{tpu_custom_call.1} parent=79 // pred_check_branch
          %926 = sbr.rel (%p924) target = $region84
        $region83: #{tpu_custom_call.1} parent=79 // pred_region
          %s927 = sand.u32 %s225, 1
          %s928 = scalar_lea.sflag [#allocation4], %s927
          %s929 = sand.u32 %s225, 1
          %s930 = smul.addr %s929, 8
          %s931 = scalar_lea.vmem [#allocation13], %s930
          %933 = dma.done %s928, 128
        $region84: #{tpu_custom_call.1} parent=79 // pred_fallthru
          _
      $region80: #{tpu_custom_call.1} parent=5 // pred_fallthru
        _
    $region6: #{tpu_custom_call.1} parent=1 // loop_footer
      %s30 = sadd.s32 1, %s26
    $region7: #{tpu_custom_call.1} parent=1 // loop_footer_branch
      %25 = sbr.rel target = $region3
    $region8: #{tpu_custom_call.1} parent=1 // loop_exit
      _
    %934 = vsyncpa [#allocation3], 1
    %s935 = scalar_lea.sflag [#allocation3], 1
    %936 = vsyncpa %s935, 1
    %937 = vsyncpa [#allocation6], 1
    %s938 = scalar_lea.sflag [#allocation6], 1
    %939 = vsyncpa %s938, 1
    %940 = vsyncpa [#allocation9], 1
    %s941 = scalar_lea.sflag [#allocation9], 1
    %942 = vsyncpa %s941, 1
    %943 = vsyncpa [#allocation12], 1
    %944 = vsyncpa [#allocation4], 1
    %s945 = scalar_lea.sflag [#allocation4], 1
    %946 = vsyncpa %s945, 1

</llo_original>
